<compile_context>
chip_gen: v7x
topology: tpu7x:2x2x1
jax: 0.10.0
libtpu: 0.0.40
codegen_flags: <defaults>
</compile_context>

<pallas_src>
import jax
import jax.numpy as jnp
from jax.experimental import pallas as pl
from jax.experimental.pallas import tpu as pltpu

C = 64  # the Mask module is hard-wired to 64 channels


def _cdiv(a, b):
    return -(-a // b)


def _mask_kernel(x_ref, m_ref, w12_ref, b12_ref, w3_ref, b3_ref, o_ref):
    # Grid-invariant weights: fused branch conv (bf16) + biases (f32 columns).
    w12 = w12_ref[...]                                   # (2C, C)  bf16
    b12 = b12_ref[...]                                   # (2C, 1)  f32
    w3 = w3_ref[...]                                     # (C, C)   bf16
    b3 = b3_ref[...]                                     # (C, 1)   f32

    nb = x_ref.shape[0]                                  # static batch block
    for b in range(nb):                                  # small, unrolled
        # Channel-major tile: channels on sublanes, spatial (>=128) on lanes.
        m = m_ref[b].astype(jnp.bfloat16)                # (C, T)

        # Fused branch conv: rows [0:C) -> tanh branch, rows [C:2C) ->
        # sigmoid branch (w2/b2 pre-scaled by 0.5 in pack_params so that
        # sigmoid(z) = 0.5 * (1 + tanh(z/2)) falls out of ONE tanh).
        y = jnp.dot(w12, m, preferred_element_type=jnp.float32) + b12
        th = jnp.tanh(y)                                 # single EUP stream

        t = th[:C, :]                                    # tanh branch
        s = 0.5 * (th[C:, :] + 1.0)                      # sigmoid branch
        g = (t * s).astype(jnp.bfloat16)                 # bf16 MXU operand

        # maskconv (1x1) + ReLU, f32 accumulate.
        r = jnp.dot(w3, g, preferred_element_type=jnp.float32) + b3
        r = jnp.maximum(r, 0.0)

        # Gate the original input (f32 in, f32 out).
        o_ref[b] = x_ref[b] * r


def _pick_tile_hw(hw, max_tile=4096):
    """Largest lane-dense spatial tile.

    Full HW for small images (block == full dim is always legal); otherwise a
    multiple of 128 with a cdiv-sized grid (partial last block handled by the
    pipeline — no full-HW fallback for awkward sizes)."""
    if hw <= max_tile:
        return hw
    return (max_tile // 128) * 128


def _pick_batch_block(n, hw, tile_hw, target_bytes=1 << 20):
    """How many images to pack per grid step (amortize per-step overhead)."""
    per_image = C * tile_hw * 4                      # f32 bytes of one slab
    nb = int(max(1, min(n, target_bytes // max(per_image, 1))))
    # Keep the grid >= 2 steps when possible so megacore / 2-TC chips stay busy.
    if n > 1 and _cdiv(hw, tile_hw) * _cdiv(n, nb) < 2:
        nb = _cdiv(n, 2)
    return nb


def pack_params(raw_params):
    """Pack PyTorch-layout (out, in) 1x1-conv weights for the fused kernel."""
    w1, b1, w2, b2, w3, b3 = raw_params
    w12 = jnp.concatenate([w1, 0.5 * w2], axis=0).astype(jnp.bfloat16)   # (2C, C)
    b12 = jnp.concatenate([b1, 0.5 * b2], axis=0).reshape(2 * C, 1)
    b12 = b12.astype(jnp.float32)                                        # (2C, 1)
    return w12, b12, w3.astype(jnp.bfloat16), b3.reshape(C, 1).astype(jnp.float32)


def mask_forward(x_nchw, mask_nchw, packed_params, *, tile_hw=None, batch_block=None):
    """x_nchw, mask_nchw: (N, 64, H, W) float32.  Returns (N, 64, H, W)."""
    w12, b12, w3, b3 = packed_params
    N, Cin, H, W = x_nchw.shape
    assert Cin == C
    HW = H * W
    if tile_hw is None:
        tile_hw = _pick_tile_hw(HW)
    assert tile_hw == HW or tile_hw % 128 == 0, "spatial tile must be lane-dense"
    if batch_block is None:
        batch_block = _pick_batch_block(N, HW, tile_hw)
    batch_block = max(1, min(batch_block, N))

    # Pure reshapes (contiguous collapse of H,W) — no transposes, no extra
    # HBM round-trips around the kernel.
    x3 = x_nchw.reshape(N, C, HW)
    m3 = mask_nchw.reshape(N, C, HW)

    grid = (_cdiv(N, batch_block), _cdiv(HW, tile_hw))

    row_spec = pl.BlockSpec((batch_block, C, tile_hw), lambda n, j: (n, 0, j))
    w12_spec = pl.BlockSpec((2 * C, C), lambda n, j: (0, 0))
    b12_spec = pl.BlockSpec((2 * C, 1), lambda n, j: (0, 0))
    w3_spec = pl.BlockSpec((C, C), lambda n, j: (0, 0))
    b3_spec = pl.BlockSpec((C, 1), lambda n, j: (0, 0))

    out = pl.pallas_call(
        _mask_kernel,
        out_shape=jax.ShapeDtypeStruct((N, C, HW), x_nchw.dtype),
        grid_spec=pltpu.PrefetchScalarGridSpec(
            num_scalar_prefetch=0,
            grid=grid,
            in_specs=[row_spec, row_spec,
                      w12_spec, b12_spec, w3_spec, b3_spec],
            out_specs=row_spec,
        ),
        compiler_params=pltpu.CompilerParams(
            dimension_semantics=("parallel", "parallel"),
            vmem_limit_bytes=40 * 1024 * 1024),
    )(x3, m3, w12, b12, w3, b3)

    return out.reshape(N, C, H, W)


def init_params(key):
    """Deterministic synthetic weights in PyTorch Conv2d layout: (out, in)."""
    ks = jax.random.split(key, 6)
    bound = 1.0 / jnp.sqrt(C)  # PyTorch default uniform bound for 1x1 conv
    w1 = jax.random.uniform(ks[0], (C, C), jnp.float32, -bound, bound)
    b1 = jax.random.uniform(ks[1], (C,), jnp.float32, -bound, bound)
    w2 = jax.random.uniform(ks[2], (C, C), jnp.float32, -bound, bound)
    b2 = jax.random.uniform(ks[3], (C,), jnp.float32, -bound, bound)
    w3 = jax.random.uniform(ks[4], (C, C), jnp.float32, -bound, bound)
    b3 = jax.random.uniform(ks[5], (C,), jnp.float32, -bound, bound)
    return (w1, b1, w2, b2, w3, b3)


def mask_forward_ref(x, mask, raw_params):
    """Plain-JAX f32 reference (same math as the PyTorch module, NCHW)."""
    w1, b1, w2, b2, w3, b3 = raw_params
    t = jnp.tanh(jnp.einsum('oc,nchw->nohw', w1, mask)
                 + b1[None, :, None, None])
    s = jax.nn.sigmoid(jnp.einsum('oc,nchw->nohw', w2, mask)
                       + b2[None, :, None, None])
    g = t * s
    r = jnp.maximum(jnp.einsum('oc,nchw->nohw', w3, g)
                    + b3[None, :, None, None], 0.0)
    return x * r


if __name__ == "__main__":
    key = jax.random.PRNGKey(0)
    k_x, k_m, k_p = jax.random.split(key, 3)

    N, H, W = 2, 16, 16  # small spatial; channels fixed at 64 by the module
    x = jax.random.normal(k_x, (N, C, H, W), jnp.float32)
    mask = jax.random.normal(k_m, (N, C, H, W), jnp.float32)

    raw_params = init_params(k_p)
    packed = pack_params(raw_params)

    ref = mask_forward_ref(x, mask, raw_params)

    # Tolerances loosened vs v2 because the MXU operands are bf16 now.
    TOL = dict(atol=5e-2, rtol=5e-2)

    # Default path (auto tile / batch-block selection).
    out = jax.block_until_ready(mask_forward(x, mask, packed))
    assert out.shape == (N, C, H, W)
    assert jnp.allclose(out, ref, **TOL)

    # Multi-tile spatial grid path.
    out_tiled = jax.block_until_ready(mask_forward(x, mask, packed, tile_hw=128))
    assert jnp.allclose(out_tiled, ref, **TOL)

    # Batch-blocked path (several images per grid step).
    out_nb = jax.block_until_ready(mask_forward(x, mask, packed, batch_block=2))
    assert jnp.allclose(out_nb, ref, **TOL)

    print("KERNEL_OK")
</pallas_src>

<mosaic_0001>
module attributes {stable_mosaic.version = 11 : i64} {
  func.func @_mask_kernel(%arg0: i32, %arg1: i32, %arg2: memref<1x64x256xf32, #tpu.memory_space<vmem>>, %arg3: memref<1x64x256xf32, #tpu.memory_space<vmem>>, %arg4: memref<128x64xbf16, #tpu.memory_space<vmem>>, %arg5: memref<128x1xf32, #tpu.memory_space<vmem>>, %arg6: memref<64x64xbf16, #tpu.memory_space<vmem>>, %arg7: memref<64x1xf32, #tpu.memory_space<vmem>>, %arg8: memref<1x64x256xf32, #tpu.memory_space<vmem>>) attributes {dimension_semantics = [#tpu.dimension_semantics<parallel>, #tpu.dimension_semantics<parallel>], iteration_bounds = array<i64: 2, 1>, scalar_prefetch = 0 : i64, scratch_operands = 0 : i64, tpu.core_type = #tpu.core_type<tc>, window_params = [{transform_indices = @transform_0, window_bounds = array<i64: 1, 64, 256>}, {transform_indices = @transform_1, window_bounds = array<i64: 1, 64, 256>}, {pipeline_mode = #tpu.pipeline_mode<synchronous>, transform_indices = @transform_2, window_bounds = array<i64: 128, 64>}, {pipeline_mode = #tpu.pipeline_mode<synchronous>, transform_indices = @transform_3, window_bounds = array<i64: 128, 1>}, {pipeline_mode = #tpu.pipeline_mode<synchronous>, transform_indices = @transform_4, window_bounds = array<i64: 64, 64>}, {pipeline_mode = #tpu.pipeline_mode<synchronous>, transform_indices = @transform_5, window_bounds = array<i64: 64, 1>}, {transform_indices = @transform_6, window_bounds = array<i64: 1, 64, 256>}]} {
    %c0 = arith.constant 0 : index
    %c0_0 = arith.constant 0 : index
    %0 = vector.load %arg4[%c0, %c0_0] : memref<128x64xbf16, #tpu.memory_space<vmem>>, vector<128x64xbf16>
    %c0_1 = arith.constant 0 : index
    %c0_2 = arith.constant 0 : index
    %1 = vector.load %arg5[%c0_1, %c0_2] : memref<128x1xf32, #tpu.memory_space<vmem>>, vector<128x1xf32>
    %c0_3 = arith.constant 0 : index
    %c0_4 = arith.constant 0 : index
    %2 = vector.load %arg6[%c0_3, %c0_4] : memref<64x64xbf16, #tpu.memory_space<vmem>>, vector<64x64xbf16>
    %c0_5 = arith.constant 0 : index
    %c0_6 = arith.constant 0 : index
    %3 = vector.load %arg7[%c0_5, %c0_6] : memref<64x1xf32, #tpu.memory_space<vmem>>, vector<64x1xf32>
    %c0_7 = arith.constant 0 : index
    %c0_8 = arith.constant 0 : index
    %c0_9 = arith.constant 0 : index
    %4 = vector.load %arg3[%c0_7, %c0_8, %c0_9] : memref<1x64x256xf32, #tpu.memory_space<vmem>>, vector<1x64x256xf32>
    %5 = vector.shape_cast %4 : vector<1x64x256xf32> to vector<64x256xf32>
    %6 = arith.truncf %5 : vector<64x256xf32> to vector<64x256xbf16>
    %cst = arith.constant dense<0.000000e+00> : vector<128x256xf32>
    %7 = tpu.matmul %0, %6, %cst {dimension_numbers = #tpu.dot_dimension_numbers<[1], [0], [0], [1], [0, 0, 1, 1], [], []>} : vector<128x64xbf16>, vector<64x256xbf16>, vector<128x256xf32> -> vector<128x256xf32>
    %8 = vector.broadcast %1 : vector<128x1xf32> to vector<128x256xf32>
    %9 = arith.addf %7, %8 : vector<128x256xf32>
    %10 = math.tanh %9 : vector<128x256xf32>
    %11 = vector.extract_strided_slice %10 {offsets = [0, 0], sizes = [64, 256], strides = [1, 1]} : vector<128x256xf32> to vector<64x256xf32>
    %12 = vector.extract_strided_slice %10 {offsets = [64, 0], sizes = [64, 256], strides = [1, 1]} : vector<128x256xf32> to vector<64x256xf32>
    %cst_10 = arith.constant 1.000000e+00 : f32
    %13 = vector.broadcast %cst_10 : f32 to vector<64x256xf32>
    %14 = arith.addf %12, %13 : vector<64x256xf32>
    %cst_11 = arith.constant 5.000000e-01 : f32
    %15 = vector.broadcast %cst_11 : f32 to vector<64x256xf32>
    %16 = arith.mulf %15, %14 : vector<64x256xf32>
    %17 = arith.mulf %11, %16 : vector<64x256xf32>
    %18 = arith.truncf %17 : vector<64x256xf32> to vector<64x256xbf16>
    %cst_12 = arith.constant dense<0.000000e+00> : vector<64x256xf32>
    %19 = tpu.matmul %2, %18, %cst_12 {dimension_numbers = #tpu.dot_dimension_numbers<[1], [0], [0], [1], [0, 0, 1, 1], [], []>} : vector<64x64xbf16>, vector<64x256xbf16>, vector<64x256xf32> -> vector<64x256xf32>
    %20 = vector.broadcast %3 : vector<64x1xf32> to vector<64x256xf32>
    %21 = arith.addf %19, %20 : vector<64x256xf32>
    %cst_13 = arith.constant 0.000000e+00 : f32
    %22 = vector.broadcast %cst_13 : f32 to vector<64x256xf32>
    %23 = arith.maximumf %21, %22 : vector<64x256xf32>
    %c0_14 = arith.constant 0 : index
    %c0_15 = arith.constant 0 : index
    %c0_16 = arith.constant 0 : index
    %24 = vector.load %arg2[%c0_14, %c0_15, %c0_16] : memref<1x64x256xf32, #tpu.memory_space<vmem>>, vector<1x64x256xf32>
    %25 = vector.shape_cast %24 : vector<1x64x256xf32> to vector<64x256xf32>
    %26 = arith.mulf %25, %23 : vector<64x256xf32>
    %c0_17 = arith.constant 0 : index
    %c0_18 = arith.constant 0 : index
    %c0_19 = arith.constant 0 : index
    %27 = vector.load %arg8[%c0_17, %c0_18, %c0_19] : memref<1x64x256xf32, #tpu.memory_space<vmem>>, vector<1x64x256xf32>
    %28 = vector.shape_cast %27 : vector<1x64x256xf32> to vector<64x256xf32>
    %29 = vector.shape_cast %26 : vector<64x256xf32> to vector<1x64x256xf32>
    tpu.vector_store %arg8[%c0_17, %c0_18, %c0_19], %29 {strides = array<i32>} : memref<1x64x256xf32, #tpu.memory_space<vmem>>, vector<1x64x256xf32>,
    return
  }
  func.func @transform_0(%arg0: i32, %arg1: i32) -> (i32, i32, i32) {
    %c0_i32 = arith.constant 0 : i32
    %c0_i32_0 = arith.constant 0 : i32
    return %arg0, %c0_i32, %arg1 : i32, i32, i32
  }
  func.func @transform_1(%arg0: i32, %arg1: i32) -> (i32, i32, i32) {
    %c0_i32 = arith.constant 0 : i32
    %c0_i32_0 = arith.constant 0 : i32
    return %arg0, %c0_i32, %arg1 : i32, i32, i32
  }
  func.func @transform_2(%arg0: i32, %arg1: i32) -> (i32, i32) {
    %c0_i32 = arith.constant 0 : i32
    %c0_i32_0 = arith.constant 0 : i32
    %c0_i32_1 = arith.constant 0 : i32
    return %c0_i32, %c0_i32_0 : i32, i32
  }
  func.func @transform_3(%arg0: i32, %arg1: i32) -> (i32, i32) {
    %c0_i32 = arith.constant 0 : i32
    %c0_i32_0 = arith.constant 0 : i32
    %c0_i32_1 = arith.constant 0 : i32
    return %c0_i32, %c0_i32_0 : i32, i32
  }
  func.func @transform_4(%arg0: i32, %arg1: i32) -> (i32, i32) {
    %c0_i32 = arith.constant 0 : i32
    %c0_i32_0 = arith.constant 0 : i32
    %c0_i32_1 = arith.constant 0 : i32
    return %c0_i32, %c0_i32_0 : i32, i32
  }
  func.func @transform_5(%arg0: i32, %arg1: i32) -> (i32, i32) {
    %c0_i32 = arith.constant 0 : i32
    %c0_i32_0 = arith.constant 0 : i32
    %c0_i32_1 = arith.constant 0 : i32
    return %c0_i32, %c0_i32_0 : i32, i32
  }
  func.func @transform_6(%arg0: i32, %arg1: i32) -> (i32, i32, i32) {
    %c0_i32 = arith.constant 0 : i32
    %c0_i32_0 = arith.constant 0 : i32
    return %arg0, %c0_i32, %arg1 : i32, i32, i32
  }
}

</mosaic_0001>

<llo_original>
// kernel: tpu_custom_call.1
$region0: #{tpu_custom_call.1}
  #allocation0 [shape = 'u32[]', space=smem, size = 0x4, offset = 0x4, fixed_abs, tag = 'smem constant byte address 0x4 - core index']
  #allocation1 [shape = 'u32[144,128]{1,0:T(1,128)}', space=vmem, size = 0x12000, scoped, tag = 'internal scratch']
  %s0 = inlined_call_operand.vmem [shape: f32[2,64,256], index: 0, kind: input, shape index: {}]
  %s1 = inlined_call_operand.hbm [shape: f32[2,64,256], index: 1, kind: input, shape index: {}]
  %s2 = inlined_call_operand.vmem [shape: bf16[128,64], index: 2, kind: input, shape index: {}]
  %s3 = inlined_call_operand.vmem [shape: f32[128,1], index: 3, kind: input, shape index: {}]
  %s4 = inlined_call_operand.vmem [shape: bf16[64,64], index: 4, kind: input, shape index: {}]
  %s5 = inlined_call_operand.vmem [shape: f32[64,1], index: 5, kind: input, shape index: {}]
  %s6 = inlined_call_operand.hbm [shape: f32[2,64,256], index: 6, kind: output, shape index: {}]
  %s7 = sld [smem:[#allocation0]]
  $region61: #{tpu_custom_call.1} parent=0
    _
  %s9 = ssub.s32 1, %s7
  %s10 = scalar_select 0, %s9, %s7
  $region1: #{tpu_custom_call.1} parent=0
    #allocation2 [shape = 'u8[131072]{0}', space=vmem, size = 0x20000, scoped, tag = 'input window, operand 1']
    #allocation3 [shape = 's32[2]{0}', space=sflag, size = 0x8, scoped, tag = 'scoped memory for tpu_custom_call.1']
    #allocation4 [shape = 's32[2]{0}', space=sflag, size = 0x8, scoped, tag = 'scoped memory for tpu_custom_call.1']
    #allocation5 [shape = 'u8[131072]{0}', space=vmem, size = 0x20000, scoped, tag = 'output window, operand 0']
    %11 = vsyncpa [#allocation3], 0
    %s12 = scalar_lea.sflag [#allocation3], 1
    %13 = vsyncpa %s12, 0
    %14 = vsyncpa [#allocation4], 0
    %s15 = scalar_lea.sflag [#allocation4], 1
    %16 = vsyncpa %s15, 0
    loop: start=0, step=1, limit=4
    $region2: #{tpu_custom_call.1} parent=1 // loop_pre_header
      _
    $region3: #{tpu_custom_call.1} parent=1 // loop_header
      %s18 = sphi 0, %s22
      %p19 = scmp.ge.s32.totalorder %s18, 4
      %s25 = sphi 0, %s37
      %s26 = sphi 0, %s33
      %s27 = sphi 0, %s25
      %s28 = sphi 0, %s26
      %s29 = sphi 0, %s27
      %s30 = sphi 0, %s28
      %s42 = sphi 0, %s44
      %s45 = sphi 0, %s42
      %s46 = sphi 0, %s45
      %s62 = sphi 0, %s46
      %s70 = sphi 0, %s72
      %s73 = sphi 0, %s70
      %s74 = sphi 0, %s73
      %s90 = sphi 0, %s74
      %s94 = sphi 0, %s94
      %s96 = sphi 0, %s94
      %s97 = sphi 0, %s96
      %s111 = sphi 0, %s97
      %s115 = sphi 0, %s115
      %s117 = sphi 0, %s115
      %s118 = sphi 0, %s117
      %s132 = sphi 0, %s118
      %s136 = sphi 0, %s136
      %s138 = sphi 0, %s136
      %s139 = sphi 0, %s138
      %s153 = sphi 0, %s139
      %s157 = sphi 0, %s157
      %s159 = sphi 0, %s157
      %s160 = sphi 0, %s159
      %s174 = sphi 0, %s160
      %s182 = sphi 0, %s184
      %s185 = sphi 0, %s182
      %s186 = sphi 0, %s185
      %s202 = sphi 0, %s186
    $region4: #{tpu_custom_call.1} parent=1 // loop_header_branch
      %21 = sbr.rel (%p19) target = $region8
    $region5: #{tpu_custom_call.1} parent=1 // loop_body
      %s23 = ssub.s32 %s18, 1
      %s24 = ssub.s32 %s18, 2
      %s31 = sadd.s32 1, %s26
      %p32 = scmp.ge.s32.totalorder %s31, 1
      %s33 = scalar_select %p32, 0, %s31
      %s34 = sadd.s32 1, %s25
      %s35 = scalar_select %p32, %s34, %s25
      %p36 = scmp.ge.s32.totalorder %s35, 2
      %s37 = scalar_select %p36, 0, %s35
      %s38 = ssub.s32 %s25, %s37
      %s39 = ssub.s32 %s26, %s33
      %s40 = sor.u32 %s38, %s39
      %p41 = scmp.eq.s32.totalorder %s40, 0
      %s43 = sadd.s32 %s42, 1
      %s44 = scalar_select %p41, %s42, %s43
      %p47 = pneg %p41
      %p48 = scmp.eq.s32.totalorder %s18, 1
      %p49 = por %p47, %p48
      %p50 = scmp.ne.s32.totalorder %s42, %s45
      %p51 = scmp.eq.s32.totalorder %s18, 0
      %p52 = por %p50, %p51
      %p53 = scmp.ne.s32.totalorder %s42, %s45
      %p54 = scmp.eq.s32.totalorder %s23, 1
      %p55 = por %p53, %p54
      %p56 = scmp.ne.s32.totalorder %s45, %s46
      %p57 = scmp.eq.s32.totalorder %s23, 0
      %p58 = por %p56, %p57
      %p59 = scmp.ne.s32.totalorder %s45, %s46
      %p60 = scmp.eq.s32.totalorder %s24, 1
      %p61 = por %p59, %p60
      %p63 = scmp.ne.s32.totalorder %s46, %s62
      %p64 = scmp.eq.s32.totalorder %s24, 0
      %p65 = por %p63, %p64
      %s66 = ssub.s32 %s25, %s37
      %s67 = ssub.s32 %s26, %s33
      %s68 = sor.u32 %s66, %s67
      %p69 = scmp.eq.s32.totalorder %s68, 0
      %s71 = sadd.s32 %s70, 1
      %s72 = scalar_select %p69, %s70, %s71
      %p75 = pneg %p69
      %p76 = scmp.eq.s32.totalorder %s18, 1
      %p77 = por %p75, %p76
      %p78 = scmp.ne.s32.totalorder %s70, %s73
      %p79 = scmp.eq.s32.totalorder %s18, 0
      %p80 = por %p78, %p79
      %p81 = scmp.ne.s32.totalorder %s70, %s73
      %p82 = scmp.eq.s32.totalorder %s23, 1
      %p83 = por %p81, %p82
      %p84 = scmp.ne.s32.totalorder %s73, %s74
      %p85 = scmp.eq.s32.totalorder %s23, 0
      %p86 = por %p84, %p85
      %p87 = scmp.ne.s32.totalorder %s73, %s74
      %p88 = scmp.eq.s32.totalorder %s24, 1
      %p89 = por %p87, %p88
      %p91 = scmp.ne.s32.totalorder %s74, %s90
      %p92 = scmp.eq.s32.totalorder %s24, 0
      %p93 = por %p91, %p92
      %s95 = sadd.s32 %s94, 1
      %p98 = scmp.eq.s32.totalorder %s18, 1
      %p99 = scmp.ne.s32.totalorder %s94, %s96
      %p100 = scmp.eq.s32.totalorder %s18, 0
      %p101 = por %p99, %p100
      %p102 = scmp.ne.s32.totalorder %s94, %s96
      %p103 = scmp.eq.s32.totalorder %s23, 1
      %p104 = por %p102, %p103
      %p105 = scmp.ne.s32.totalorder %s96, %s97
      %p106 = scmp.eq.s32.totalorder %s23, 0
      %p107 = por %p105, %p106
      %p108 = scmp.ne.s32.totalorder %s96, %s97
      %p109 = scmp.eq.s32.totalorder %s24, 1
      %p110 = por %p108, %p109
      %p112 = scmp.ne.s32.totalorder %s97, %s111
      %p113 = scmp.eq.s32.totalorder %s24, 0
      %p114 = por %p112, %p113
      %s116 = sadd.s32 %s115, 1
      %p119 = scmp.eq.s32.totalorder %s18, 1
      %p120 = scmp.ne.s32.totalorder %s115, %s117
      %p121 = scmp.eq.s32.totalorder %s18, 0
      %p122 = por %p120, %p121
      %p123 = scmp.ne.s32.totalorder %s115, %s117
      %p124 = scmp.eq.s32.totalorder %s23, 1
      %p125 = por %p123, %p124
      %p126 = scmp.ne.s32.totalorder %s117, %s118
      %p127 = scmp.eq.s32.totalorder %s23, 0
      %p128 = por %p126, %p127
      %p129 = scmp.ne.s32.totalorder %s117, %s118
      %p130 = scmp.eq.s32.totalorder %s24, 1
      %p131 = por %p129, %p130
      %p133 = scmp.ne.s32.totalorder %s118, %s132
      %p134 = scmp.eq.s32.totalorder %s24, 0
      %p135 = por %p133, %p134
      %s137 = sadd.s32 %s136, 1
      %p140 = scmp.eq.s32.totalorder %s18, 1
      %p141 = scmp.ne.s32.totalorder %s136, %s138
      %p142 = scmp.eq.s32.totalorder %s18, 0
      %p143 = por %p141, %p142
      %p144 = scmp.ne.s32.totalorder %s136, %s138
      %p145 = scmp.eq.s32.totalorder %s23, 1
      %p146 = por %p144, %p145
      %p147 = scmp.ne.s32.totalorder %s138, %s139
      %p148 = scmp.eq.s32.totalorder %s23, 0
      %p149 = por %p147, %p148
      %p150 = scmp.ne.s32.totalorder %s138, %s139
      %p151 = scmp.eq.s32.totalorder %s24, 1
      %p152 = por %p150, %p151
      %p154 = scmp.ne.s32.totalorder %s139, %s153
      %p155 = scmp.eq.s32.totalorder %s24, 0
      %p156 = por %p154, %p155
      %s158 = sadd.s32 %s157, 1
      %p161 = scmp.eq.s32.totalorder %s18, 1
      %p162 = scmp.ne.s32.totalorder %s157, %s159
      %p163 = scmp.eq.s32.totalorder %s18, 0
      %p164 = por %p162, %p163
      %p165 = scmp.ne.s32.totalorder %s157, %s159
      %p166 = scmp.eq.s32.totalorder %s23, 1
      %p167 = por %p165, %p166
      %p168 = scmp.ne.s32.totalorder %s159, %s160
      %p169 = scmp.eq.s32.totalorder %s23, 0
      %p170 = por %p168, %p169
      %p171 = scmp.ne.s32.totalorder %s159, %s160
      %p172 = scmp.eq.s32.totalorder %s24, 1
      %p173 = por %p171, %p172
      %p175 = scmp.ne.s32.totalorder %s160, %s174
      %p176 = scmp.eq.s32.totalorder %s24, 0
      %p177 = por %p175, %p176
      %s178 = ssub.s32 %s25, %s37
      %s179 = ssub.s32 %s26, %s33
      %s180 = sor.u32 %s178, %s179
      %p181 = scmp.eq.s32.totalorder %s180, 0
      %s183 = sadd.s32 %s182, 1
      %s184 = scalar_select %p181, %s182, %s183
      %p187 = pneg %p181
      %p188 = scmp.eq.s32.totalorder %s18, 1
      %p189 = por %p187, %p188
      %p190 = scmp.ne.s32.totalorder %s182, %s185
      %p191 = scmp.eq.s32.totalorder %s18, 0
      %p192 = por %p190, %p191
      %p193 = scmp.ne.s32.totalorder %s182, %s185
      %p194 = scmp.eq.s32.totalorder %s23, 1
      %p195 = por %p193, %p194
      %p196 = scmp.ne.s32.totalorder %s185, %s186
      %p197 = scmp.eq.s32.totalorder %s23, 0
      %p198 = por %p196, %p197
      %p199 = scmp.ne.s32.totalorder %s185, %s186
      %p200 = scmp.eq.s32.totalorder %s24, 1
      %p201 = por %p199, %p200
      %p203 = scmp.ne.s32.totalorder %s186, %s202
      %p204 = scmp.eq.s32.totalorder %s24, 0
      %p205 = por %p203, %p204
      %p206 = scmp.le.s32.totalorder 1, %s18
      %p207 = scmp.lt.s32.totalorder %s18, 3
      %p208 = pnand %p206, %p207
      %p209 = pneg %p208
      // Predicated region
      $region9: #{tpu_custom_call.1} parent=5 // pred_check
        _
      $region10: #{tpu_custom_call.1} parent=5 // pred_check_branch
        %211 = sbr.rel (%p208) target = $region12
      $region11: #{tpu_custom_call.1} parent=5 // pred_region
        %s212 = ssub.s32 %s18, 1
        // Predicated region
        $region13: #{tpu_custom_call.1} parent=11 // pred_check
          %p213 = pneg %p107
        $region14: #{tpu_custom_call.1} parent=11 // pred_check_branch
          %215 = sbr.rel (%p213) target = $region16
        $region15: #{tpu_custom_call.1} parent=11 // pred_region
          _
        $region16: #{tpu_custom_call.1} parent=11 // pred_fallthru
          _
        // Predicated region
        $region17: #{tpu_custom_call.1} parent=11 // pred_check
          %p216 = pneg %p128
        $region18: #{tpu_custom_call.1} parent=11 // pred_check_branch
          %218 = sbr.rel (%p216) target = $region20
        $region19: #{tpu_custom_call.1} parent=11 // pred_region
          _
        $region20: #{tpu_custom_call.1} parent=11 // pred_fallthru
          _
        // Predicated region
        $region21: #{tpu_custom_call.1} parent=11 // pred_check
          %p219 = pneg %p149
        $region22: #{tpu_custom_call.1} parent=11 // pred_check_branch
          %221 = sbr.rel (%p219) target = $region24
        $region23: #{tpu_custom_call.1} parent=11 // pred_region
          _
        $region24: #{tpu_custom_call.1} parent=11 // pred_fallthru
          _
        // Predicated region
        $region25: #{tpu_custom_call.1} parent=11 // pred_check
          %p222 = pneg %p170
        $region26: #{tpu_custom_call.1} parent=11 // pred_check_branch
          %224 = sbr.rel (%p222) target = $region28
        $region27: #{tpu_custom_call.1} parent=11 // pred_region
          _
        $region28: #{tpu_custom_call.1} parent=11 // pred_fallthru
          _
      $region12: #{tpu_custom_call.1} parent=5 // pred_fallthru
        _
      %p225 = scmp.lt.s32.totalorder %s18, 2
      // Predicated region
      $region29: #{tpu_custom_call.1} parent=5 // pred_check
        %p226 = pneg %p225
      $region30: #{tpu_custom_call.1} parent=5 // pred_check_branch
        %228 = sbr.rel (%p226) target = $region32
      $region31: #{tpu_custom_call.1} parent=5 // pred_region
        // Predicated region
        $region33: #{tpu_custom_call.1} parent=31 // pred_check
          %p229 = pneg %p52
        $region34: #{tpu_custom_call.1} parent=31 // pred_check_branch
          %231 = sbr.rel (%p229) target = $region36
        $region35: #{tpu_custom_call.1} parent=31 // pred_region
          %s232 = smul.u32 2, %s26
          %p233 = scmp.lt.s32.totalorder %s25, 1
          %s234 = scalar_select %p233, %s25, 1
          %p235 = scmp.lt.s32.totalorder %s232, 1
          %s236 = scalar_select %p235, %s232, 1
          %s237 = smul.addr %s234, 16
          %s238 = sadd.s32 %s236, %s237
          %s239 = smul.addr %s238, 8
          %s240 = scalar_lea.vmem %s0, %s239
          %s241 = smul.u32 2, %s26
        $region36: #{tpu_custom_call.1} parent=31 // pred_fallthru
          _
        // Predicated region
        $region37: #{tpu_custom_call.1} parent=31 // pred_check
          %p242 = pneg %p80
        $region38: #{tpu_custom_call.1} parent=31 // pred_check_branch
          %244 = sbr.rel (%p242) target = $region40
        $region39: #{tpu_custom_call.1} parent=31 // pred_region
          %s245 = sand.u32 %s70, 1
          %s246 = scalar_lea.sflag [#allocation3], %s245
          %s247 = sand.u32 %s70, 1
          %s248 = smul.addr %s247, 128
          %s249 = scalar_lea.vmem [#allocation2], %s248
          %s250 = smul.u32 2, %s26
          %s252 = ssub.s32 2048, 2048
          %253 = vsyncadd %s246, %s252
          %s254 = smul.addr %s25, 16
          %s255 = sadd.s32 %s250, %s254
          %s256 = smul.addr %s255, 128
          %s257 = scalar_lea.hbm %s1, %s256
          %s258 = sshll.u32 %s249, 4
          %s259 = int_to_ptr.vmem [resolvable:$true] %s258
          %264 = dma.hbm_to_vmem [thread:$0]  %s257, 2048, %s259, %s246, 256, 256, 16
        $region40: #{tpu_custom_call.1} parent=31 // pred_fallthru
          _
      $region32: #{tpu_custom_call.1} parent=5 // pred_fallthru
        _
      %p265 = scmp.le.s32.totalorder 1, %s18
      %p266 = scmp.lt.s32.totalorder %s18, 3
      %p267 = pnand %p265, %p266
      %p268 = pneg %p267
      // Predicated region
      $region41: #{tpu_custom_call.1} parent=5 // pred_check
        _
      $region42: #{tpu_custom_call.1} parent=5 // pred_check_branch
        %270 = sbr.rel (%p267) target = $region44
      $region43: #{tpu_custom_call.1} parent=5 // pred_region
        %s271 = ssub.s32 %s18, 1
        %s272 = sand.u32 %s73, 1
        %s273 = scalar_lea.sflag [#allocation3], %s272
        %s274 = sand.u32 %s73, 1
        %s275 = smul.addr %s274, 128
        %s276 = scalar_lea.vmem [#allocation2], %s275
        // Predicated region
        $region45: #{tpu_custom_call.1} parent=43 // pred_check
          %p277 = pneg %p86
        $region46: #{tpu_custom_call.1} parent=43 // pred_check_branch
          %279 = sbr.rel (%p277) target = $region48
        $region47: #{tpu_custom_call.1} parent=43 // pred_region
          %280 = dma.done %s273, 2048
        $region48: #{tpu_custom_call.1} parent=43 // pred_fallthru
          _
        %s281 = smul.u32 2, %s28
        %p282 = scmp.lt.s32.totalorder %s27, 1
        %s283 = scalar_select %p282, %s27, 1
        %p284 = scmp.lt.s32.totalorder %s281, 1
        %s285 = scalar_select %p284, %s281, 1
        %s286 = smul.addr %s283, 16
        %s287 = sadd.s32 %s285, %s286
        %s288 = smul.addr %s287, 8
        %s289 = scalar_lea.vmem %s0, %s288
        %p290 = pneg %p58
        %p291 = pneg %p55
        %s292 = sand.u32 %s73, 1
        %s293 = scalar_lea.sflag [#allocation3], %s292
        %s294 = sand.u32 %s73, 1
        %s295 = smul.addr %s294, 128
        %s296 = scalar_lea.vmem [#allocation2], %s295
        %p297 = pneg %p86
        %p298 = pneg %p83
        %p299 = pneg %p107
        %p300 = pneg %p104
        %p301 = pneg %p128
        %p302 = pneg %p125
        %p303 = pneg %p149
        %p304 = pneg %p146
        %p305 = pneg %p170
        %p306 = pneg %p167
        %p307 = pneg %p198
        %p308 = pneg %p195
        %s309 = sand.u32 %s185, 1
        %s310 = scalar_lea.sflag [#allocation4], %s309
        %s311 = sand.u32 %s185, 1
        %s312 = smul.addr %s311, 128
        %s313 = scalar_lea.vmem [#allocation5], %s312
        %s314 = smul.u32 2, %s28
        %p315 = scmp.lt.s32.totalorder %s27, 1
        %s316 = scalar_select %p315, %s27, 1
        %p317 = scmp.lt.s32.totalorder %s314, 1
        %s318 = scalar_select %p317, %s314, 1
        %s319 = smul.addr %s316, 16
        %s320 = sadd.s32 %s318, %s319
        %s321 = smul.addr %s320, 8
        %s322 = scalar_lea.vmem %s0, %s321
        %s323 = smul.u32 2, %s28
        %s324 = smul.u32 2, %s28
        %s325 = smul.u32 2, %s28
        %v327 = vld [vmem:[%s2] sm:$0xf]
        %v328 = vld [vmem:[%s2 + $0x4] sm:$0xf]
        %v329 = vld [vmem:[%s2 + $0x8] sm:$0xf]
        %v330 = vld [vmem:[%s2 + $0xc] sm:$0xf]
        %v331 = vld [vmem:[%s2 + $0x10] sm:$0xf]
        %v332 = vld [vmem:[%s2 + $0x14] sm:$0xf]
        %v333 = vld [vmem:[%s2 + $0x18] sm:$0xf]
        %v334 = vld [vmem:[%s2 + $0x1c] sm:$0xf]
        %v335 = vld [vmem:[%s2 + $0x20] sm:$0xf]
        %v336 = vld [vmem:[%s2 + $0x24] sm:$0xf]
        %v337 = vld [vmem:[%s2 + $0x28] sm:$0xf]
        %v338 = vld [vmem:[%s2 + $0x2c] sm:$0xf]
        %v339 = vld [vmem:[%s2 + $0x30] sm:$0xf]
        %v340 = vld [vmem:[%s2 + $0x34] sm:$0xf]
        %v341 = vld [vmem:[%s2 + $0x38] sm:$0xf]
        %v342 = vld [vmem:[%s2 + $0x3c] sm:$0xf]
        %v343 = vld [vmem:[%s3] sm:$0xff]
        %v344 = vld [vmem:[%s3 + $0x8] sm:$0xff]
        %v345 = vld [vmem:[%s3 + $0x10] sm:$0xff]
        %v346 = vld [vmem:[%s3 + $0x18] sm:$0xff]
        %v347 = vld [vmem:[%s3 + $0x20] sm:$0xff]
        %v348 = vld [vmem:[%s3 + $0x28] sm:$0xff]
        %v349 = vld [vmem:[%s3 + $0x30] sm:$0xff]
        %v350 = vld [vmem:[%s3 + $0x38] sm:$0xff]
        %v351 = vld [vmem:[%s3 + $0x40] sm:$0xff]
        %v352 = vld [vmem:[%s3 + $0x48] sm:$0xff]
        %v353 = vld [vmem:[%s3 + $0x50] sm:$0xff]
        %v354 = vld [vmem:[%s3 + $0x58] sm:$0xff]
        %v355 = vld [vmem:[%s3 + $0x60] sm:$0xff]
        %v356 = vld [vmem:[%s3 + $0x68] sm:$0xff]
        %v357 = vld [vmem:[%s3 + $0x70] sm:$0xff]
        %v358 = vld [vmem:[%s3 + $0x78] sm:$0xff]
        %v359 = vld [vmem:[%s4] sm:$0xf]
        %v360 = vld [vmem:[%s4 + $0x4] sm:$0xf]
        %v361 = vld [vmem:[%s4 + $0x8] sm:$0xf]
        %v362 = vld [vmem:[%s4 + $0xc] sm:$0xf]
        %v363 = vld [vmem:[%s4 + $0x10] sm:$0xf]
        %v364 = vld [vmem:[%s4 + $0x14] sm:$0xf]
        %v365 = vld [vmem:[%s4 + $0x18] sm:$0xf]
        %v366 = vld [vmem:[%s4 + $0x1c] sm:$0xf]
        %v367 = vld [vmem:[%s5] sm:$0xff]
        %v368 = vld [vmem:[%s5 + $0x8] sm:$0xff]
        %v369 = vld [vmem:[%s5 + $0x10] sm:$0xff]
        %v370 = vld [vmem:[%s5 + $0x18] sm:$0xff]
        %v371 = vld [vmem:[%s5 + $0x20] sm:$0xff]
        %v372 = vld [vmem:[%s5 + $0x28] sm:$0xff]
        %v373 = vld [vmem:[%s5 + $0x30] sm:$0xff]
        %v374 = vld [vmem:[%s5 + $0x38] sm:$0xff]
        %v375 = vld [vmem:[%s276] sm:$0xff]
        %v376 = vld [vmem:[%s276 + $0x8] sm:$0xff]
        %v377 = vld [vmem:[%s276 + $0x10] sm:$0xff]
        %v378 = vld [vmem:[%s276 + $0x18] sm:$0xff]
        %v379 = vld [vmem:[%s276 + $0x20] sm:$0xff]
        %v380 = vld [vmem:[%s276 + $0x28] sm:$0xff]
        %v381 = vld [vmem:[%s276 + $0x30] sm:$0xff]
        %v382 = vld [vmem:[%s276 + $0x38] sm:$0xff]
        %v383 = vld [vmem:[%s276 + $0x40] sm:$0xff]
        %v384 = vld [vmem:[%s276 + $0x48] sm:$0xff]
        %v385 = vld [vmem:[%s276 + $0x50] sm:$0xff]
        %v386 = vld [vmem:[%s276 + $0x58] sm:$0xff]
        %v387 = vld [vmem:[%s276 + $0x60] sm:$0xff]
        %v388 = vld [vmem:[%s276 + $0x68] sm:$0xff]
        %v389 = vld [vmem:[%s276 + $0x70] sm:$0xff]
        %v390 = vld [vmem:[%s276 + $0x78] sm:$0xff]
        %v391 = vpack.c.bf16 %v377, %v375
        %v392 = vpack.c.bf16 %v378, %v376
        %v393 = vpack.c.bf16 %v381, %v379
        %v394 = vpack.c.bf16 %v382, %v380
        %v395 = vpack.c.bf16 %v385, %v383
        %v396 = vpack.c.bf16 %v386, %v384
        %v397 = vpack.c.bf16 %v389, %v387
        %v398 = vpack.c.bf16 %v390, %v388
        %400 = vset.pattern.permute.xlu0 0
        %401 = vperm.xlu0 %400, %v343
        %v402 = vpop.permute.xlu0 %401
        %405 = vset.pattern.permute.xlu0 0
        %406 = vperm.xlu0 %405, %v344
        %v407 = vpop.permute.xlu0 %406
        %410 = vset.pattern.permute.xlu0 0
        %411 = vperm.xlu0 %410, %v345
        %v412 = vpop.permute.xlu0 %411
        %415 = vset.pattern.permute.xlu0 0
        %416 = vperm.xlu0 %415, %v346
        %v417 = vpop.permute.xlu0 %416
        %420 = vset.pattern.permute.xlu0 0
        %421 = vperm.xlu0 %420, %v347
        %v422 = vpop.permute.xlu0 %421
        %425 = vset.pattern.permute.xlu0 0
        %426 = vperm.xlu0 %425, %v348
        %v427 = vpop.permute.xlu0 %426
        %430 = vset.pattern.permute.xlu0 0
        %431 = vperm.xlu0 %430, %v349
        %v432 = vpop.permute.xlu0 %431
        %435 = vset.pattern.permute.xlu0 0
        %436 = vperm.xlu0 %435, %v350
        %v437 = vpop.permute.xlu0 %436
        %440 = vset.pattern.permute.xlu0 0
        %441 = vperm.xlu0 %440, %v351
        %v442 = vpop.permute.xlu0 %441
        %445 = vset.pattern.permute.xlu0 0
        %446 = vperm.xlu0 %445, %v352
        %v447 = vpop.permute.xlu0 %446
        %450 = vset.pattern.permute.xlu0 0
        %451 = vperm.xlu0 %450, %v353
        %v452 = vpop.permute.xlu0 %451
        %455 = vset.pattern.permute.xlu0 0
        %456 = vperm.xlu0 %455, %v354
        %v457 = vpop.permute.xlu0 %456
        %460 = vset.pattern.permute.xlu0 0
        %461 = vperm.xlu0 %460, %v355
        %v462 = vpop.permute.xlu0 %461
        %465 = vset.pattern.permute.xlu0 0
        %466 = vperm.xlu0 %465, %v356
        %v467 = vpop.permute.xlu0 %466
        %470 = vset.pattern.permute.xlu0 0
        %471 = vperm.xlu0 %470, %v357
        %v472 = vpop.permute.xlu0 %471
        %475 = vset.pattern.permute.xlu0 0
        %476 = vperm.xlu0 %475, %v358
        %v477 = vpop.permute.xlu0 %476
        %v495 = vunpack.c.l.b16 %v327
        %v496 = vunpack.c.l.b16 %v328
        %v497 = vunpack.c.l.b16 %v329
        %v498 = vunpack.c.l.b16 %v330
        %v499 = vunpack.c.l.b16 %v331
        %v500 = vunpack.c.l.b16 %v332
        %v501 = vunpack.c.l.b16 %v333
        %v502 = vunpack.c.l.b16 %v334
        %v503 = vunpack.c.l.b16 %v335
        %v504 = vunpack.c.l.b16 %v336
        %v505 = vunpack.c.l.b16 %v337
        %v506 = vunpack.c.l.b16 %v338
        %v507 = vunpack.c.l.b16 %v339
        %v508 = vunpack.c.l.b16 %v340
        %v509 = vunpack.c.l.b16 %v341
        %v510 = vunpack.c.l.b16 %v342
        %v511 = vpack.c.b16 %v496, %v495
        %v512 = vpack.c.b16 %v498, %v497
        %v513 = vpack.c.b16 %v500, %v499
        %v514 = vpack.c.b16 %v502, %v501
        %v515 = vpack.c.b16 %v504, %v503
        %v516 = vpack.c.b16 %v506, %v505
        %v517 = vpack.c.b16 %v508, %v507
        %v518 = vpack.c.b16 %v510, %v509
        %vm519 = vcmask 523264
        %v521 = vsel %vm519, %v511, 0
        %v524 = vsel %vm519, %v512, 0
        %v527 = vsel %vm519, %v513, 0
        %v530 = vsel %vm519, %v514, 0
        %v533 = vsel %vm519, %v515, 0
        %v536 = vsel %vm519, %v516, 0
        %v539 = vsel %vm519, %v517, 0
        %v542 = vsel %vm519, %v518, 0
        %544 = vmatprep.subr.bf16.mxu0 %v392
        %545 = vmatpush1.bf16.msra.mxu0 %v391
        %546 = vmatprep.subr.bf16.mxu0 %v394
        %547 = vmatpush1.bf16.msra.mxu0 %v393
        %548 = vmatprep.subr.bf16.mxu0 %v396
        %549 = vmatpush1.bf16.msra.mxu0 %v395
        %550 = vmatprep.subr.bf16.mxu0 %v398
        %551 = vmatpush1.bf16.msra.mxu0 %v397
        %552 = vmatprep.subr.bf16.mxu0 0
        %553 = vmatpush1.bf16.msra.mxu0 0
        %554 = vmatprep.subr.bf16.mxu0 0
        %555 = vmatpush1.bf16.msra.mxu0 0
        %556 = vmatprep.subr.bf16.mxu0 0
        %557 = vmatpush1.bf16.msra.mxu0 0
        %558 = vmatprep.subr.bf16.mxu0 0
        %559 = vmatpush1.bf16.msra.mxu0 0
        %560 = vmatprep.subr.bf16.mxu0 0
        %561 = vmatpush1.bf16.msra.mxu0 0
        %562 = vmatprep.subr.bf16.mxu0 0
        %563 = vmatpush1.bf16.msra.mxu0 0
        %564 = vmatprep.subr.bf16.mxu0 0
        %565 = vmatpush1.bf16.msra.mxu0 0
        %566 = vmatprep.subr.bf16.mxu0 0
        %567 = vmatpush1.bf16.msra.mxu0 0
        %568 = vmatprep.subr.bf16.mxu0 0
        %569 = vmatpush1.bf16.msra.mxu0 0
        %570 = vmatprep.subr.bf16.mxu0 0
        %571 = vmatpush1.bf16.msra.mxu0 0
        %572 = vmatprep.subr.bf16.mxu0 0
        %573 = vmatpush1.bf16.msra.mxu0 0
        %574 = vmatprep.subr.bf16.mxu0 0
        %575 = vmatpush1.bf16.msra.mxu0 0
        %576 = vmatprep.mubr.bf16.mxu0 0
        %577 = vmatmul.mubr.bf16.gmra.mrb[0].mxu0 %v521
        %v578 = vpop.f32.mrb[0].mxu0
        %v579 = vadd.f32 %v402, %v578
        %v580 = vpop.f32.mrb[0].mxu0
        %v581 = vadd.f32 %v402, %v580
        %v582 = vpop.f32.mrb[0].mxu0
        %v583 = vadd.f32 %v407, %v582
        %v584 = vpop.f32.mrb[0].mxu0
        %v585 = vadd.f32 %v407, %v584
        %586 = vmatprep.mubr.bf16.mxu0 0
        %587 = vmatmul.mubr.bf16.gmra.mrb[0].mxu0 %v524
        %v588 = vpop.f32.mrb[0].mxu0
        %v589 = vadd.f32 %v412, %v588
        %v590 = vpop.f32.mrb[0].mxu0
        %v591 = vadd.f32 %v412, %v590
        %v592 = vpop.f32.mrb[0].mxu0
        %v593 = vadd.f32 %v417, %v592
        %v594 = vpop.f32.mrb[0].mxu0
        %v595 = vadd.f32 %v417, %v594
        %596 = vmatprep.mubr.bf16.mxu0 0
        %597 = vmatmul.mubr.bf16.gmra.mrb[0].mxu0 %v527
        %v598 = vpop.f32.mrb[0].mxu0
        %v599 = vadd.f32 %v422, %v598
        %v600 = vpop.f32.mrb[0].mxu0
        %v601 = vadd.f32 %v422, %v600
        %v602 = vpop.f32.mrb[0].mxu0
        %v603 = vadd.f32 %v427, %v602
        %v604 = vpop.f32.mrb[0].mxu0
        %v605 = vadd.f32 %v427, %v604
        %606 = vmatprep.mubr.bf16.mxu0 0
        %607 = vmatmul.mubr.bf16.gmra.mrb[0].mxu0 %v530
        %v608 = vpop.f32.mrb[0].mxu0
        %v609 = vadd.f32 %v432, %v608
        %v610 = vpop.f32.mrb[0].mxu0
        %v611 = vadd.f32 %v432, %v610
        %v612 = vpop.f32.mrb[0].mxu0
        %v613 = vadd.f32 %v437, %v612
        %v614 = vpop.f32.mrb[0].mxu0
        %v615 = vadd.f32 %v437, %v614
        %616 = vmatprep.mubr.bf16.mxu0 0
        %617 = vmatmul.mubr.bf16.gmra.mrb[0].mxu0 %v533
        %v618 = vpop.f32.mrb[0].mxu0
        %v619 = vadd.f32 %v442, %v618
        %v620 = vpop.f32.mrb[0].mxu0
        %v621 = vadd.f32 %v442, %v620
        %v622 = vpop.f32.mrb[0].mxu0
        %v623 = vadd.f32 %v447, %v622
        %v624 = vpop.f32.mrb[0].mxu0
        %v625 = vadd.f32 %v447, %v624
        %626 = vmatprep.mubr.bf16.mxu0 0
        %627 = vmatmul.mubr.bf16.gmra.mrb[0].mxu0 %v536
        %v628 = vpop.f32.mrb[0].mxu0
        %v629 = vadd.f32 %v452, %v628
        %v630 = vpop.f32.mrb[0].mxu0
        %v631 = vadd.f32 %v452, %v630
        %v632 = vpop.f32.mrb[0].mxu0
        %v633 = vadd.f32 %v457, %v632
        %v634 = vpop.f32.mrb[0].mxu0
        %v635 = vadd.f32 %v457, %v634
        %636 = vmatprep.mubr.bf16.mxu0 0
        %637 = vmatmul.mubr.bf16.gmra.mrb[0].mxu0 %v539
        %v638 = vpop.f32.mrb[0].mxu0
        %v639 = vadd.f32 %v462, %v638
        %v640 = vpop.f32.mrb[0].mxu0
        %v641 = vadd.f32 %v462, %v640
        %v642 = vpop.f32.mrb[0].mxu0
        %v643 = vadd.f32 %v467, %v642
        %v644 = vpop.f32.mrb[0].mxu0
        %v645 = vadd.f32 %v467, %v644
        %646 = vmatprep.mubr.bf16.mxu0 0
        %647 = vmatmul.mubr.bf16.gmra.mrb[0].mxu0 %v542
        %v648 = vpop.f32.mrb[0].mxu0
        %v649 = vadd.f32 %v472, %v648
        %v650 = vpop.f32.mrb[0].mxu0
        %v651 = vadd.f32 %v472, %v650
        %v652 = vpop.f32.mrb[0].mxu0
        %v653 = vadd.f32 %v477, %v652
        %v654 = vpop.f32.mrb[0].mxu0
        %v655 = vadd.f32 %v477, %v654
        %656 = vdwg.mxu0
        %v657 = vtanh.pop %v579
        %v658 = vtanh.pop %v581
        %v659 = vtanh.pop %v583
        %v660 = vtanh.pop %v585
        %v661 = vtanh.pop %v589
        %v662 = vtanh.pop %v591
        %v663 = vtanh.pop %v593
        %v664 = vtanh.pop %v595
        %v665 = vtanh.pop %v599
        %v666 = vtanh.pop %v601
        %v667 = vtanh.pop %v603
        %v668 = vtanh.pop %v605
        %v669 = vtanh.pop %v609
        %v670 = vtanh.pop %v611
        %v671 = vtanh.pop %v613
        %v672 = vtanh.pop %v615
        %v673 = vtanh.pop %v619
        %v674 = vtanh.pop %v621
        %v675 = vtanh.pop %v623
        %v676 = vtanh.pop %v625
        %v677 = vtanh.pop %v629
        %v678 = vtanh.pop %v631
        %v679 = vtanh.pop %v633
        %v680 = vtanh.pop %v635
        %v681 = vtanh.pop %v639
        %v682 = vtanh.pop %v641
        %v683 = vtanh.pop %v643
        %v684 = vtanh.pop %v645
        %v685 = vtanh.pop %v649
        %v686 = vtanh.pop %v651
        %v687 = vtanh.pop %v653
        %v688 = vtanh.pop %v655
        %v689 = vadd.f32 %v673, 1.0
        %v690 = vadd.f32 %v674, 1.0
        %v691 = vadd.f32 %v675, 1.0
        %v692 = vadd.f32 %v676, 1.0
        %v693 = vadd.f32 %v677, 1.0
        %v694 = vadd.f32 %v678, 1.0
        %v695 = vadd.f32 %v679, 1.0
        %v696 = vadd.f32 %v680, 1.0
        %v697 = vadd.f32 %v681, 1.0
        %v698 = vadd.f32 %v682, 1.0
        %v699 = vadd.f32 %v683, 1.0
        %v700 = vadd.f32 %v684, 1.0
        %v701 = vadd.f32 %v685, 1.0
        %v702 = vadd.f32 %v686, 1.0
        %v703 = vadd.f32 %v687, 1.0
        %v704 = vadd.f32 %v688, 1.0
        %v705 = vmul.f32 %v689, 0.5
        %v706 = vmul.f32 %v690, 0.5
        %v707 = vmul.f32 %v691, 0.5
        %v708 = vmul.f32 %v692, 0.5
        %v709 = vmul.f32 %v693, 0.5
        %v710 = vmul.f32 %v694, 0.5
        %v711 = vmul.f32 %v695, 0.5
        %v712 = vmul.f32 %v696, 0.5
        %v713 = vmul.f32 %v697, 0.5
        %v714 = vmul.f32 %v698, 0.5
        %v715 = vmul.f32 %v699, 0.5
        %v716 = vmul.f32 %v700, 0.5
        %v717 = vmul.f32 %v701, 0.5
        %v718 = vmul.f32 %v702, 0.5
        %v719 = vmul.f32 %v703, 0.5
        %v720 = vmul.f32 %v704, 0.5
        %v721 = vmul.f32 %v657, %v705
        %v722 = vmul.f32 %v658, %v706
        %v723 = vmul.f32 %v659, %v707
        %v724 = vmul.f32 %v660, %v708
        %v725 = vmul.f32 %v661, %v709
        %v726 = vmul.f32 %v662, %v710
        %v727 = vmul.f32 %v663, %v711
        %v728 = vmul.f32 %v664, %v712
        %v729 = vmul.f32 %v665, %v713
        %v730 = vmul.f32 %v666, %v714
        %v731 = vmul.f32 %v667, %v715
        %v732 = vmul.f32 %v668, %v716
        %v733 = vmul.f32 %v669, %v717
        %v734 = vmul.f32 %v670, %v718
        %v735 = vmul.f32 %v671, %v719
        %v736 = vmul.f32 %v672, %v720
        %v737 = vpack.c.bf16 %v723, %v721
        %v738 = vpack.c.bf16 %v724, %v722
        %v739 = vpack.c.bf16 %v727, %v725
        %v740 = vpack.c.bf16 %v728, %v726
        %v741 = vpack.c.bf16 %v731, %v729
        %v742 = vpack.c.bf16 %v732, %v730
        %v743 = vpack.c.bf16 %v735, %v733
        %v744 = vpack.c.bf16 %v736, %v734
        %746 = vset.pattern.permute.xlu0 0
        %747 = vperm.xlu0 %746, %v367
        %v748 = vpop.permute.xlu0 %747
        %751 = vset.pattern.permute.xlu0 0
        %752 = vperm.xlu0 %751, %v368
        %v753 = vpop.permute.xlu0 %752
        %756 = vset.pattern.permute.xlu0 0
        %757 = vperm.xlu0 %756, %v369
        %v758 = vpop.permute.xlu0 %757
        %761 = vset.pattern.permute.xlu0 0
        %762 = vperm.xlu0 %761, %v370
        %v763 = vpop.permute.xlu0 %762
        %766 = vset.pattern.permute.xlu0 0
        %767 = vperm.xlu0 %766, %v371
        %v768 = vpop.permute.xlu0 %767
        %771 = vset.pattern.permute.xlu0 0
        %772 = vperm.xlu0 %771, %v372
        %v773 = vpop.permute.xlu0 %772
        %776 = vset.pattern.permute.xlu0 0
        %777 = vperm.xlu0 %776, %v373
        %v778 = vpop.permute.xlu0 %777
        %781 = vset.pattern.permute.xlu0 0
        %782 = vperm.xlu0 %781, %v374
        %v783 = vpop.permute.xlu0 %782
        %v793 = vunpack.c.l.b16 %v359
        %v794 = vunpack.c.l.b16 %v360
        %v795 = vunpack.c.l.b16 %v361
        %v796 = vunpack.c.l.b16 %v362
        %v797 = vunpack.c.l.b16 %v363
        %v798 = vunpack.c.l.b16 %v364
        %v799 = vunpack.c.l.b16 %v365
        %v800 = vunpack.c.l.b16 %v366
        %v801 = vpack.c.b16 %v794, %v793
        %v802 = vpack.c.b16 %v796, %v795
        %v803 = vpack.c.b16 %v798, %v797
        %v804 = vpack.c.b16 %v800, %v799
        %v806 = vsel %vm519, %v801, 0
        %v809 = vsel %vm519, %v802, 0
        %v812 = vsel %vm519, %v803, 0
        %v815 = vsel %vm519, %v804, 0
        %817 = vmatprep.subr.bf16.mxu0 %v738
        %818 = vmatpush1.bf16.msra.mxu0 %v737
        %819 = vmatprep.subr.bf16.mxu0 %v740
        %820 = vmatpush1.bf16.msra.mxu0 %v739
        %821 = vmatprep.subr.bf16.mxu0 %v742
        %822 = vmatpush1.bf16.msra.mxu0 %v741
        %823 = vmatprep.subr.bf16.mxu0 %v744
        %824 = vmatpush1.bf16.msra.mxu0 %v743
        %825 = vmatprep.subr.bf16.mxu0 0
        %826 = vmatpush1.bf16.msra.mxu0 0
        %827 = vmatprep.subr.bf16.mxu0 0
        %828 = vmatpush1.bf16.msra.mxu0 0
        %829 = vmatprep.subr.bf16.mxu0 0
        %830 = vmatpush1.bf16.msra.mxu0 0
        %831 = vmatprep.subr.bf16.mxu0 0
        %832 = vmatpush1.bf16.msra.mxu0 0
        %833 = vmatprep.subr.bf16.mxu0 0
        %834 = vmatpush1.bf16.msra.mxu0 0
        %835 = vmatprep.subr.bf16.mxu0 0
        %836 = vmatpush1.bf16.msra.mxu0 0
        %837 = vmatprep.subr.bf16.mxu0 0
        %838 = vmatpush1.bf16.msra.mxu0 0
        %839 = vmatprep.subr.bf16.mxu0 0
        %840 = vmatpush1.bf16.msra.mxu0 0
        %841 = vmatprep.subr.bf16.mxu0 0
        %842 = vmatpush1.bf16.msra.mxu0 0
        %843 = vmatprep.subr.bf16.mxu0 0
        %844 = vmatpush1.bf16.msra.mxu0 0
        %845 = vmatprep.subr.bf16.mxu0 0
        %846 = vmatpush1.bf16.msra.mxu0 0
        %847 = vmatprep.subr.bf16.mxu0 0
        %848 = vmatpush1.bf16.msra.mxu0 0
        %849 = vmatprep.mubr.bf16.mxu0 0
        %850 = vmatmul.mubr.bf16.gmra.mrb[0].mxu0 %v806
        %v851 = vpop.f32.mrb[0].mxu0
        %v852 = vadd.f32 %v748, %v851
        %v853 = vpop.f32.mrb[0].mxu0
        %v854 = vadd.f32 %v748, %v853
        %v855 = vpop.f32.mrb[0].mxu0
        %v856 = vadd.f32 %v753, %v855
        %v857 = vpop.f32.mrb[0].mxu0
        %v858 = vadd.f32 %v753, %v857
        %859 = vmatprep.mubr.bf16.mxu0 0
        %860 = vmatmul.mubr.bf16.gmra.mrb[0].mxu0 %v809
        %v861 = vpop.f32.mrb[0].mxu0
        %v862 = vadd.f32 %v758, %v861
        %v863 = vpop.f32.mrb[0].mxu0
        %v864 = vadd.f32 %v758, %v863
        %v865 = vpop.f32.mrb[0].mxu0
        %v866 = vadd.f32 %v763, %v865
        %v867 = vpop.f32.mrb[0].mxu0
        %v868 = vadd.f32 %v763, %v867
        %869 = vmatprep.mubr.bf16.mxu0 0
        %870 = vmatmul.mubr.bf16.gmra.mrb[0].mxu0 %v812
        %v871 = vpop.f32.mrb[0].mxu0
        %v872 = vadd.f32 %v768, %v871
        %v873 = vpop.f32.mrb[0].mxu0
        %v874 = vadd.f32 %v768, %v873
        %v875 = vpop.f32.mrb[0].mxu0
        %v876 = vadd.f32 %v773, %v875
        %v877 = vpop.f32.mrb[0].mxu0
        %v878 = vadd.f32 %v773, %v877
        %879 = vmatprep.mubr.bf16.mxu0 0
        %880 = vmatmul.mubr.bf16.gmra.mrb[0].mxu0 %v815
        %v881 = vpop.f32.mrb[0].mxu0
        %v882 = vadd.f32 %v778, %v881
        %v883 = vpop.f32.mrb[0].mxu0
        %v884 = vadd.f32 %v778, %v883
        %v885 = vpop.f32.mrb[0].mxu0
        %v886 = vadd.f32 %v783, %v885
        %v887 = vpop.f32.mrb[0].mxu0
        %v888 = vadd.f32 %v783, %v887
        %889 = vdwg.mxu0
        %v890 = vmax.f32 %v852, 0.0
        %v891 = vmax.f32 %v854, 0.0
        %v892 = vmax.f32 %v856, 0.0
        %v893 = vmax.f32 %v858, 0.0
        %v894 = vmax.f32 %v862, 0.0
        %v895 = vmax.f32 %v864, 0.0
        %v896 = vmax.f32 %v866, 0.0
        %v897 = vmax.f32 %v868, 0.0
        %v898 = vmax.f32 %v872, 0.0
        %v899 = vmax.f32 %v874, 0.0
        %v900 = vmax.f32 %v876, 0.0
        %v901 = vmax.f32 %v878, 0.0
        %v902 = vmax.f32 %v882, 0.0
        %v903 = vmax.f32 %v884, 0.0
        %v904 = vmax.f32 %v886, 0.0
        %v905 = vmax.f32 %v888, 0.0
        %v906 = vld [vmem:[%s322] sm:$0xff]
        %v907 = vld [vmem:[%s322 + $0x8] sm:$0xff]
        %v908 = vld [vmem:[%s322 + $0x10] sm:$0xff]
        %v909 = vld [vmem:[%s322 + $0x18] sm:$0xff]
        %v910 = vld [vmem:[%s322 + $0x20] sm:$0xff]
        %v911 = vld [vmem:[%s322 + $0x28] sm:$0xff]
        %v912 = vld [vmem:[%s322 + $0x30] sm:$0xff]
        %v913 = vld [vmem:[%s322 + $0x38] sm:$0xff]
        %v914 = vld [vmem:[%s322 + $0x40] sm:$0xff]
        %v915 = vld [vmem:[%s322 + $0x48] sm:$0xff]
        %v916 = vld [vmem:[%s322 + $0x50] sm:$0xff]
        %v917 = vld [vmem:[%s322 + $0x58] sm:$0xff]
        %v918 = vld [vmem:[%s322 + $0x60] sm:$0xff]
        %v919 = vld [vmem:[%s322 + $0x68] sm:$0xff]
        %v920 = vld [vmem:[%s322 + $0x70] sm:$0xff]
        %v921 = vld [vmem:[%s322 + $0x78] sm:$0xff]
        %v922 = vmul.f32 %v906, %v890
        %v923 = vmul.f32 %v907, %v891
        %v924 = vmul.f32 %v908, %v892
        %v925 = vmul.f32 %v909, %v893
        %v926 = vmul.f32 %v910, %v894
        %v927 = vmul.f32 %v911, %v895
        %v928 = vmul.f32 %v912, %v896
        %v929 = vmul.f32 %v913, %v897
        %v930 = vmul.f32 %v914, %v898
        %v931 = vmul.f32 %v915, %v899
        %v932 = vmul.f32 %v916, %v900
        %v933 = vmul.f32 %v917, %v901
        %v934 = vmul.f32 %v918, %v902
        %v935 = vmul.f32 %v919, %v903
        %v936 = vmul.f32 %v920, %v904
        %v937 = vmul.f32 %v921, %v905
        %938 = vst [vmem:[%s313] sm:$0xff] %v922
        %939 = vst [vmem:[%s313 + $0x8] sm:$0xff] %v923
        %940 = vst [vmem:[%s313 + $0x10] sm:$0xff] %v924
        %941 = vst [vmem:[%s313 + $0x18] sm:$0xff] %v925
        %942 = vst [vmem:[%s313 + $0x20] sm:$0xff] %v926
        %943 = vst [vmem:[%s313 + $0x28] sm:$0xff] %v927
        %944 = vst [vmem:[%s313 + $0x30] sm:$0xff] %v928
        %945 = vst [vmem:[%s313 + $0x38] sm:$0xff] %v929
        %946 = vst [vmem:[%s313 + $0x40] sm:$0xff] %v930
        %947 = vst [vmem:[%s313 + $0x48] sm:$0xff] %v931
        %948 = vst [vmem:[%s313 + $0x50] sm:$0xff] %v932
        %949 = vst [vmem:[%s313 + $0x58] sm:$0xff] %v933
        %950 = vst [vmem:[%s313 + $0x60] sm:$0xff] %v934
        %951 = vst [vmem:[%s313 + $0x68] sm:$0xff] %v935
        %952 = vst [vmem:[%s313 + $0x70] sm:$0xff] %v936
        %953 = vst [vmem:[%s313 + $0x78] sm:$0xff] %v937
        %s954 = sand.u32 %s185, 1
        %s955 = scalar_lea.sflag [#allocation4], %s954
        %s956 = sand.u32 %s185, 1
        %s957 = smul.addr %s956, 128
        %s958 = scalar_lea.vmem [#allocation5], %s957
        // Predicated region
        $region49: #{tpu_custom_call.1} parent=43 // pred_check
          %p959 = pneg %p195
        $region50: #{tpu_custom_call.1} parent=43 // pred_check_branch
          %961 = sbr.rel (%p959) target = $region52
        $region51: #{tpu_custom_call.1} parent=43 // pred_region
          %s962 = smul.u32 2, %s28
          %s964 = ssub.s32 2048, 2048
          %965 = vsyncadd %s955, %s964
          %s966 = smul.addr %s27, 16
          %s967 = sadd.s32 %s962, %s966
          %s968 = smul.addr %s967, 128
          %s969 = scalar_lea.hbm %s6, %s968
          %s970 = sshll.u32 %s958, 4
          %s971 = int_to_ptr.vmem [resolvable:$true] %s970
          %976 = dma.vmem_to_hbm [thread:$0]  %s971, 2048, %s969, %s955, 256, 256, 16
        $region52: #{tpu_custom_call.1} parent=43 // pred_fallthru
          _
      $region44: #{tpu_custom_call.1} parent=5 // pred_fallthru
        _
      %p977 = scmp.le.s32.totalorder 2, %s18
      // Predicated region
      $region53: #{tpu_custom_call.1} parent=5 // pred_check
        %p978 = pneg %p977
      $region54: #{tpu_custom_call.1} parent=5 // pred_check_branch
        %980 = sbr.rel (%p978) target = $region56
      $region55: #{tpu_custom_call.1} parent=5 // pred_region
        %s981 = ssub.s32 %s18, 2
        // Predicated region
        $region57: #{tpu_custom_call.1} parent=55 // pred_check
          %p982 = pneg %p201
        $region58: #{tpu_custom_call.1} parent=55 // pred_check_branch
          %984 = sbr.rel (%p982) target = $region60
        $region59: #{tpu_custom_call.1} parent=55 // pred_region
          %s985 = sand.u32 %s186, 1
          %s986 = scalar_lea.sflag [#allocation4], %s985
          %s987 = sand.u32 %s186, 1
          %s988 = smul.addr %s987, 128
          %s989 = scalar_lea.vmem [#allocation5], %s988
          %990 = dma.done %s986, 2048
        $region60: #{tpu_custom_call.1} parent=55 // pred_fallthru
          _
      $region56: #{tpu_custom_call.1} parent=5 // pred_fallthru
        _
    $region6: #{tpu_custom_call.1} parent=1 // loop_footer
      %s22 = sadd.s32 1, %s18
    $region7: #{tpu_custom_call.1} parent=1 // loop_footer_branch
      %17 = sbr.rel target = $region3
    $region8: #{tpu_custom_call.1} parent=1 // loop_exit
      _
    %991 = vsyncpa [#allocation3], 1
    %s992 = scalar_lea.sflag [#allocation3], 1
    %993 = vsyncpa %s992, 1
    %994 = vsyncpa [#allocation4], 1
    %s995 = scalar_lea.sflag [#allocation4], 1
    %996 = vsyncpa %s995, 1

</llo_original>
